<compile_context>
chip_gen: v7x
topology: tpu7x:2x2x1
jax: 0.10.0
libtpu: 0.0.40
codegen_flags: <defaults>
</compile_context>

<pallas_src>
import math

import jax
import jax.numpy as jnp
from jax.experimental import pallas as pl
from jax.experimental.pallas import tpu as pltpu


def _dynreg_kernel(theta_ref, x_ref, o_ref):
    # theta_ref: (Bk, 1) f32 per-row scale (resident, same block every step)
    # x_ref:     (Bk, block_f) tile of the repacked activations (input dtype)
    # Multiply in f32 in-register (f32 * bf16 promotes), cast back on store.
    o_ref[...] = (theta_ref[...] * x_ref[...]).astype(o_ref.dtype)


def _pick_repack_factor(B, F):
    """Smallest K with (B*K) % 8 == 0 and F % K == 0 (fill vreg sublanes)."""
    if B % 8 == 0:
        return 1
    want = 8 // math.gcd(B, 8)
    for cand in (want, 2 * want, 4 * want):
        if F % cand == 0:
            return cand
    return 1  # fall back: correct, just sublane-wasteful


def _round_up(v, m):
    return ((v + m - 1) // m) * m


def dynamic_regularization(x, key=None, *, R=0.0, d=0.0, A=5.0,
                           training=True, target_tile_bytes=2 << 20):
    """Pallas forward pass of DynamicRegularization.

    x:   (B, C, H, W) array (NCHW, matching the PyTorch module); dtype preserved.
    key: jax PRNG key used to sample the per-batch uniform r (training only).
    Returns (out, r) with out.dtype == x.dtype and r the (B,) f32 draw.
    """
    B, C, H, W = x.shape
    F = C * H * W
    dtype = x.dtype
    dtype_bytes = jnp.dtype(dtype).itemsize

    # ---- per-batch theta, computed once in the wrapper (B scalars) ----------
    if training:
        assert key is not None, "training mode needs a PRNG key"
        r = jax.random.uniform(key, (B,), dtype=jnp.float32,
                               minval=-float(R), maxval=float(R))
        theta = jnp.float32(A) + jnp.float32(d) * r
    else:
        r = jnp.zeros((B,), dtype=jnp.float32)
        theta = jnp.full((B,), float(A), dtype=jnp.float32)

    # ---- repack (B, F) -> (Bk, Fk) to fill all 8 sublanes at small batch ----
    K = _pick_repack_factor(B, F)
    Bk, Fk = B * K, F // K
    xf = x.reshape(Bk, Fk)
    theta_k = jnp.repeat(theta, K).reshape(Bk, 1)   # row i -> batch i // K

    # ---- feature-tile sizing: ~2 MiB per tile, multiple of 128 lanes --------
    block_f = max(128, (target_tile_bytes // max(1, Bk * dtype_bytes)) // 128 * 128)
    if block_f >= Fk:
        block_f = Fk                      # single full-width block (always legal)
    n_blocks = pl.cdiv(Fk, block_f)
    # v7x has 2 TensorCores: keep >= 2 blocks on the 'parallel' axis if possible.
    if n_blocks < 2 and Fk > 128:
        block_f = max(128, _round_up(-(-Fk // 2), 128))
        n_blocks = pl.cdiv(Fk, block_f)
    grid = (n_blocks,)

    out_flat = pl.pallas_call(
        _dynreg_kernel,
        out_shape=jax.ShapeDtypeStruct((Bk, Fk), dtype),
        grid=grid,
        in_specs=[
            # (Bk, 1) theta column: same block every grid step (stays resident)
            pl.BlockSpec((Bk, 1), lambda j: (0, 0)),
            # (Bk, block_f) tile of the repacked activations
            pl.BlockSpec((Bk, block_f), lambda j: (0, j)),
        ],
        out_specs=pl.BlockSpec((Bk, block_f), lambda j: (0, j)),
        compiler_params=pltpu.CompilerParams(
            dimension_semantics=("parallel",)),
    )(theta_k, xf)

    return out_flat.reshape(B, C, H, W), r


if __name__ == "__main__":
    key = jax.random.PRNGKey(0)
    k_x, k_r = jax.random.split(key)

    # Small NCHW shapes consistent with the module's 4-D inputs.
    B, C, H, W = 2, 4, 16, 16
    x = jax.random.normal(k_x, (B, C, H, W), dtype=jnp.float32)

    # --- training mode (nontrivial R, d to exercise the per-batch scaling) ---
    R, d, A = 1.0, 0.1, 5.0
    out_train, r = dynamic_regularization(x, k_r, R=R, d=d, A=A, training=True)
    out_train = jax.block_until_ready(out_train)

    theta = (A + d * r).reshape(B, 1, 1, 1)
    ref_train = theta * x
    assert out_train.dtype == x.dtype
    assert jnp.allclose(out_train, ref_train, atol=1e-5, rtol=1e-5)

    # --- eval mode (module defaults R=0, d=0, A=5): out = A * x --------------
    out_eval, _ = dynamic_regularization(x, k_r, R=0.0, d=0.0, A=5.0,
                                         training=False)
    out_eval = jax.block_until_ready(out_eval)
    assert jnp.allclose(out_eval, 5.0 * x, atol=1e-5, rtol=1e-5)

    # --- bf16 path: dtype is preserved (halves HBM traffic vs forcing f32) ---
    x_bf = x.astype(jnp.bfloat16)
    out_bf, r_bf = dynamic_regularization(x_bf, k_r, R=R, d=d, A=A,
                                          training=True)
    out_bf = jax.block_until_ready(out_bf)
    assert out_bf.dtype == jnp.bfloat16
    ref_bf = ((A + d * r_bf).reshape(B, 1, 1, 1)
              * x_bf.astype(jnp.float32)).astype(jnp.bfloat16)
    assert jnp.allclose(out_bf.astype(jnp.float32),
                        ref_bf.astype(jnp.float32), atol=1e-2, rtol=1e-2)

    print("KERNEL_OK")
</pallas_src>

<mosaic_0001>
module attributes {stable_mosaic.version = 11 : i64} {
  func.func @_dynreg_kernel(%arg0: i32, %arg1: memref<8x1xf32, #tpu.memory_space<vmem>>, %arg2: memref<8x128xf32, #tpu.memory_space<vmem>>, %arg3: memref<8x128xf32, #tpu.memory_space<vmem>>) attributes {dimension_semantics = [#tpu.dimension_semantics<parallel>], iteration_bounds = array<i64: 2>, scalar_prefetch = 0 : i64, scratch_operands = 0 : i64, tpu.core_type = #tpu.core_type<tc>, window_params = [{pipeline_mode = #tpu.pipeline_mode<synchronous>, transform_indices = @transform_0, window_bounds = array<i64: 8, 1>}, {transform_indices = @transform_1, window_bounds = array<i64: 8, 128>}, {transform_indices = @transform_2, window_bounds = array<i64: 8, 128>}]} {
    %c0 = arith.constant 0 : index
    %c0_0 = arith.constant 0 : index
    %0 = vector.load %arg1[%c0, %c0_0] : memref<8x1xf32, #tpu.memory_space<vmem>>, vector<8x1xf32>
    %c0_1 = arith.constant 0 : index
    %c0_2 = arith.constant 0 : index
    %1 = vector.load %arg2[%c0_1, %c0_2] : memref<8x128xf32, #tpu.memory_space<vmem>>, vector<8x128xf32>
    %2 = vector.broadcast %0 : vector<8x1xf32> to vector<8x128xf32>
    %3 = arith.mulf %2, %1 : vector<8x128xf32>
    %c0_3 = arith.constant 0 : index
    %c0_4 = arith.constant 0 : index
    %4 = vector.load %arg3[%c0_3, %c0_4] : memref<8x128xf32, #tpu.memory_space<vmem>>, vector<8x128xf32>
    tpu.vector_store %arg3[%c0_3, %c0_4], %3 {strides = array<i32>} : memref<8x128xf32, #tpu.memory_space<vmem>>, vector<8x128xf32>,
    return
  }
  func.func @transform_0(%arg0: i32) -> (i32, i32) {
    %c0_i32 = arith.constant 0 : i32
    %c0_i32_0 = arith.constant 0 : i32
    %c0_i32_1 = arith.constant 0 : i32
    return %c0_i32, %c0_i32_0 : i32, i32
  }
  func.func @transform_1(%arg0: i32) -> (i32, i32) {
    %c0_i32 = arith.constant 0 : i32
    %c0_i32_0 = arith.constant 0 : i32
    return %c0_i32, %arg0 : i32, i32
  }
  func.func @transform_2(%arg0: i32) -> (i32, i32) {
    %c0_i32 = arith.constant 0 : i32
    %c0_i32_0 = arith.constant 0 : i32
    return %c0_i32, %arg0 : i32, i32
  }
}

</mosaic_0001>

<llo_original>
// kernel: tpu_custom_call.1
$region0: #{tpu_custom_call.1}
  #allocation0 [shape = 'u32[]', space=smem, size = 0x4, offset = 0x4, fixed_abs, tag = 'smem constant byte address 0x4 - core index']
  #allocation1 [shape = 'u32[144,128]{1,0:T(1,128)}', space=vmem, size = 0x12000, scoped, tag = 'internal scratch']
  %s0 = inlined_call_operand.vmem [shape: f32[8,1], index: 0, kind: input, shape index: {}]
  %s1 = inlined_call_operand.hbm [shape: f32[8,256], index: 1, kind: input, shape index: {}]
  %s2 = inlined_call_operand.hbm [shape: f32[8,256], index: 2, kind: output, shape index: {}]
  %s3 = sld [smem:[#allocation0]]
  $region45: #{tpu_custom_call.1} parent=0
    _
  %s5 = ssub.s32 1, %s3
  %s6 = scalar_select 0, %s5, %s3
  $region1: #{tpu_custom_call.1} parent=0
    #allocation2 [shape = 'u8[8192]{0}', space=vmem, size = 0x2000, scoped, tag = 'input window, operand 1']
    #allocation3 [shape = 's32[2]{0}', space=sflag, size = 0x8, scoped, tag = 'scoped memory for tpu_custom_call.1']
    #allocation4 [shape = 's32[2]{0}', space=sflag, size = 0x8, scoped, tag = 'scoped memory for tpu_custom_call.1']
    #allocation5 [shape = 'u8[8192]{0}', space=vmem, size = 0x2000, scoped, tag = 'output window, operand 0']
    %7 = vsyncpa [#allocation3], 0
    %s8 = scalar_lea.sflag [#allocation3], 1
    %9 = vsyncpa %s8, 0
    %10 = vsyncpa [#allocation4], 0
    %s11 = scalar_lea.sflag [#allocation4], 1
    %12 = vsyncpa %s11, 0
    loop: start=0, step=1, limit=4
    $region2: #{tpu_custom_call.1} parent=1 // loop_pre_header
      _
    $region3: #{tpu_custom_call.1} parent=1 // loop_header
      %s14 = sphi 0, %s18
      %p15 = scmp.ge.s32.totalorder %s14, 4
      %s22 = sphi 0, %s22
      %s24 = sphi 0, %s22
      %s25 = sphi 0, %s24
      %s39 = sphi 0, %s25
      %s45 = sphi 0, %s47
      %s48 = sphi 0, %s45
      %s49 = sphi 0, %s48
      %s65 = sphi 0, %s49
      %s71 = sphi 0, %s73
      %s74 = sphi 0, %s71
      %s75 = sphi 0, %s74
      %s91 = sphi 0, %s75
    $region4: #{tpu_custom_call.1} parent=1 // loop_header_branch
      %17 = sbr.rel (%p15) target = $region8
    $region5: #{tpu_custom_call.1} parent=1 // loop_body
      %s19 = ssub.s32 %s14, 1
      %s20 = ssub.s32 %s14, 2
      %s21 = sadd.s32 %s14, 1
      %s23 = sadd.s32 %s22, 1
      %p26 = scmp.eq.s32.totalorder %s14, 1
      %p27 = scmp.ne.s32.totalorder %s22, %s24
      %p28 = scmp.eq.s32.totalorder %s14, 0
      %p29 = por %p27, %p28
      %p30 = scmp.ne.s32.totalorder %s22, %s24
      %p31 = scmp.eq.s32.totalorder %s19, 1
      %p32 = por %p30, %p31
      %p33 = scmp.ne.s32.totalorder %s24, %s25
      %p34 = scmp.eq.s32.totalorder %s19, 0
      %p35 = por %p33, %p34
      %p36 = scmp.ne.s32.totalorder %s24, %s25
      %p37 = scmp.eq.s32.totalorder %s20, 1
      %p38 = por %p36, %p37
      %p40 = scmp.ne.s32.totalorder %s25, %s39
      %p41 = scmp.eq.s32.totalorder %s20, 0
      %p42 = por %p40, %p41
      %s43 = ssub.s32 %s14, %s21
      %p44 = scmp.eq.s32.totalorder %s43, 0
      %s46 = sadd.s32 %s45, 1
      %s47 = scalar_select %p44, %s45, %s46
      %p50 = pneg %p44
      %p51 = scmp.eq.s32.totalorder %s14, 1
      %p52 = por %p50, %p51
      %p53 = scmp.ne.s32.totalorder %s45, %s48
      %p54 = scmp.eq.s32.totalorder %s14, 0
      %p55 = por %p53, %p54
      %p56 = scmp.ne.s32.totalorder %s45, %s48
      %p57 = scmp.eq.s32.totalorder %s19, 1
      %p58 = por %p56, %p57
      %p59 = scmp.ne.s32.totalorder %s48, %s49
      %p60 = scmp.eq.s32.totalorder %s19, 0
      %p61 = por %p59, %p60
      %p62 = scmp.ne.s32.totalorder %s48, %s49
      %p63 = scmp.eq.s32.totalorder %s20, 1
      %p64 = por %p62, %p63
      %p66 = scmp.ne.s32.totalorder %s49, %s65
      %p67 = scmp.eq.s32.totalorder %s20, 0
      %p68 = por %p66, %p67
      %s69 = ssub.s32 %s14, %s21
      %p70 = scmp.eq.s32.totalorder %s69, 0
      %s72 = sadd.s32 %s71, 1
      %s73 = scalar_select %p70, %s71, %s72
      %p76 = pneg %p70
      %p77 = scmp.eq.s32.totalorder %s14, 1
      %p78 = por %p76, %p77
      %p79 = scmp.ne.s32.totalorder %s71, %s74
      %p80 = scmp.eq.s32.totalorder %s14, 0
      %p81 = por %p79, %p80
      %p82 = scmp.ne.s32.totalorder %s71, %s74
      %p83 = scmp.eq.s32.totalorder %s19, 1
      %p84 = por %p82, %p83
      %p85 = scmp.ne.s32.totalorder %s74, %s75
      %p86 = scmp.eq.s32.totalorder %s19, 0
      %p87 = por %p85, %p86
      %p88 = scmp.ne.s32.totalorder %s74, %s75
      %p89 = scmp.eq.s32.totalorder %s20, 1
      %p90 = por %p88, %p89
      %p92 = scmp.ne.s32.totalorder %s75, %s91
      %p93 = scmp.eq.s32.totalorder %s20, 0
      %p94 = por %p92, %p93
      %p95 = scmp.le.s32.totalorder 1, %s14
      %p96 = scmp.lt.s32.totalorder %s14, 3
      %p97 = pnand %p95, %p96
      %p98 = pneg %p97
      // Predicated region
      $region9: #{tpu_custom_call.1} parent=5 // pred_check
        _
      $region10: #{tpu_custom_call.1} parent=5 // pred_check_branch
        %100 = sbr.rel (%p97) target = $region12
      $region11: #{tpu_custom_call.1} parent=5 // pred_region
        %s101 = ssub.s32 %s14, 1
        // Predicated region
        $region13: #{tpu_custom_call.1} parent=11 // pred_check
          %p102 = pneg %p35
        $region14: #{tpu_custom_call.1} parent=11 // pred_check_branch
          %104 = sbr.rel (%p102) target = $region16
        $region15: #{tpu_custom_call.1} parent=11 // pred_region
          _
        $region16: #{tpu_custom_call.1} parent=11 // pred_fallthru
          _
      $region12: #{tpu_custom_call.1} parent=5 // pred_fallthru
        _
      %p105 = scmp.lt.s32.totalorder %s14, 2
      // Predicated region
      $region17: #{tpu_custom_call.1} parent=5 // pred_check
        %p106 = pneg %p105
      $region18: #{tpu_custom_call.1} parent=5 // pred_check_branch
        %108 = sbr.rel (%p106) target = $region20
      $region19: #{tpu_custom_call.1} parent=5 // pred_region
        // Predicated region
        $region21: #{tpu_custom_call.1} parent=19 // pred_check
          %p109 = pneg %p55
        $region22: #{tpu_custom_call.1} parent=19 // pred_check_branch
          %111 = sbr.rel (%p109) target = $region24
        $region23: #{tpu_custom_call.1} parent=19 // pred_region
          %s112 = sand.u32 %s45, 1
          %s113 = scalar_lea.sflag [#allocation3], %s112
          %s114 = sand.u32 %s45, 1
          %s115 = smul.addr %s114, 8
          %s116 = scalar_lea.vmem [#allocation2], %s115
          %s118 = ssub.s32 128, 128
          %119 = vsyncadd %s113, %s118
          %s120 = smul.addr %s14, 128
          %s121 = scalar_lea.hbm %s1, %s120
          %s123 = sshll.u32 %s116, 4
          %s124 = int_to_ptr.vmem [resolvable:$true] %s123
          %126 = dma.hbm_to_vmem [thread:$0]  %s121, 128, %s124, %s113
        $region24: #{tpu_custom_call.1} parent=19 // pred_fallthru
          _
      $region20: #{tpu_custom_call.1} parent=5 // pred_fallthru
        _
      %p127 = scmp.le.s32.totalorder 1, %s14
      %p128 = scmp.lt.s32.totalorder %s14, 3
      %p129 = pnand %p127, %p128
      %p130 = pneg %p129
      // Predicated region
      $region25: #{tpu_custom_call.1} parent=5 // pred_check
        _
      $region26: #{tpu_custom_call.1} parent=5 // pred_check_branch
        %132 = sbr.rel (%p129) target = $region28
      $region27: #{tpu_custom_call.1} parent=5 // pred_region
        %s133 = ssub.s32 %s14, 1
        %s134 = sand.u32 %s48, 1
        %s135 = scalar_lea.sflag [#allocation3], %s134
        %s136 = sand.u32 %s48, 1
        %s137 = smul.addr %s136, 8
        %s138 = scalar_lea.vmem [#allocation2], %s137
        // Predicated region
        $region29: #{tpu_custom_call.1} parent=27 // pred_check
          %p139 = pneg %p61
        $region30: #{tpu_custom_call.1} parent=27 // pred_check_branch
          %141 = sbr.rel (%p139) target = $region32
        $region31: #{tpu_custom_call.1} parent=27 // pred_region
          %142 = dma.done %s135, 128
        $region32: #{tpu_custom_call.1} parent=27 // pred_fallthru
          _
        %p143 = pneg %p35
        %p144 = pneg %p32
        %s145 = sand.u32 %s48, 1
        %s146 = scalar_lea.sflag [#allocation3], %s145
        %s147 = sand.u32 %s48, 1
        %s148 = smul.addr %s147, 8
        %s149 = scalar_lea.vmem [#allocation2], %s148
        %p150 = pneg %p61
        %p151 = pneg %p58
        %p152 = pneg %p87
        %p153 = pneg %p84
        %s154 = sand.u32 %s74, 1
        %s155 = scalar_lea.sflag [#allocation4], %s154
        %s156 = sand.u32 %s74, 1
        %s157 = smul.addr %s156, 8
        %s158 = scalar_lea.vmem [#allocation5], %s157
        %v159 = vld [vmem:[%s0] sm:$0xff]
        %v160 = vld [vmem:[%s138] sm:$0xff]
        %162 = vset.pattern.permute.xlu0 0
        %163 = vperm.xlu0 %162, %v159
        %v164 = vpop.permute.xlu0 %163
        %v166 = vmul.f32 %v164, %v160
        %167 = vst [vmem:[%s158] sm:$0xff] %v166
        %s168 = sand.u32 %s74, 1
        %s169 = scalar_lea.sflag [#allocation4], %s168
        %s170 = sand.u32 %s74, 1
        %s171 = smul.addr %s170, 8
        %s172 = scalar_lea.vmem [#allocation5], %s171
        // Predicated region
        $region33: #{tpu_custom_call.1} parent=27 // pred_check
          %p173 = pneg %p84
        $region34: #{tpu_custom_call.1} parent=27 // pred_check_branch
          %175 = sbr.rel (%p173) target = $region36
        $region35: #{tpu_custom_call.1} parent=27 // pred_region
          %s177 = ssub.s32 128, 128
          %178 = vsyncadd %s169, %s177
          %s179 = smul.addr %s19, 128
          %s180 = scalar_lea.hbm %s2, %s179
          %s182 = sshll.u32 %s172, 4
          %s183 = int_to_ptr.vmem [resolvable:$true] %s182
          %185 = dma.vmem_to_hbm [thread:$0]  %s183, 128, %s180, %s169
        $region36: #{tpu_custom_call.1} parent=27 // pred_fallthru
          _
      $region28: #{tpu_custom_call.1} parent=5 // pred_fallthru
        _
      %p186 = scmp.le.s32.totalorder 2, %s14
      // Predicated region
      $region37: #{tpu_custom_call.1} parent=5 // pred_check
        %p187 = pneg %p186
      $region38: #{tpu_custom_call.1} parent=5 // pred_check_branch
        %189 = sbr.rel (%p187) target = $region40
      $region39: #{tpu_custom_call.1} parent=5 // pred_region
        %s190 = ssub.s32 %s14, 2
        // Predicated region
        $region41: #{tpu_custom_call.1} parent=39 // pred_check
          %p191 = pneg %p90
        $region42: #{tpu_custom_call.1} parent=39 // pred_check_branch
          %193 = sbr.rel (%p191) target = $region44
        $region43: #{tpu_custom_call.1} parent=39 // pred_region
          %s194 = sand.u32 %s75, 1
          %s195 = scalar_lea.sflag [#allocation4], %s194
          %s196 = sand.u32 %s75, 1
          %s197 = smul.addr %s196, 8
          %s198 = scalar_lea.vmem [#allocation5], %s197
          %199 = dma.done %s195, 128
        $region44: #{tpu_custom_call.1} parent=39 // pred_fallthru
          _
      $region40: #{tpu_custom_call.1} parent=5 // pred_fallthru
        _
    $region6: #{tpu_custom_call.1} parent=1 // loop_footer
      %s18 = sadd.s32 1, %s14
    $region7: #{tpu_custom_call.1} parent=1 // loop_footer_branch
      %13 = sbr.rel target = $region3
    $region8: #{tpu_custom_call.1} parent=1 // loop_exit
      _
    %200 = vsyncpa [#allocation3], 1
    %s201 = scalar_lea.sflag [#allocation3], 1
    %202 = vsyncpa %s201, 1
    %203 = vsyncpa [#allocation4], 1
    %s204 = scalar_lea.sflag [#allocation4], 1
    %205 = vsyncpa %s204, 1

</llo_original>
